<compile_context>
chip_gen: v6e
topology: v6e:2x2x1
jax: 0.10.0
libtpu: 0.0.40
codegen_flags: <defaults>
</compile_context>

<pallas_src>
import math

import jax
import jax.numpy as jnp
from jax import lax
from jax.experimental import pallas as pl
from jax.experimental.pallas import tpu as pltpu


def _round_up(x, m):
    return (x + m - 1) // m * m


# ---------------------------------------------------------------------------
# Kernel 1: projection to hidden + partial batch-norm statistics
# ---------------------------------------------------------------------------
def _proj_stats_kernel(x_ref, w1t_ref, h_ref, stats_ref):
    # x_ref:     (TN, Cin_p)   bf16 token tile
    # w1t_ref:   (Cin_p, Ch_p) bf16 transposed layer-1 weight (resident, loop-invariant)
    # h_ref:     (TN, Ch_p)    bf16 hidden activations (pre-BN)
    # stats_ref: (1, 2, Ch_p)  f32: row 0 = per-channel sum, row 1 = per-channel sum-of-squares
    h = jnp.dot(x_ref[...], w1t_ref[...], preferred_element_type=jnp.float32)
    h_ref[...] = h.astype(h_ref.dtype)

    s = jnp.sum(h, axis=0, keepdims=True)        # (1, Ch_p)
    q = jnp.sum(h * h, axis=0, keepdims=True)    # (1, Ch_p)
    row = lax.broadcasted_iota(jnp.int32, (2, h.shape[1]), 0)
    stats_ref[...] = jnp.where(row == 0, s, q)[None]   # (1, 2, Ch_p)


# ---------------------------------------------------------------------------
# Kernel 2: batch-norm affine + ReLU + projection to output
# ---------------------------------------------------------------------------
def _bn_relu_proj_kernel(h_ref, scale_ref, shift_ref, w2t_ref, y_ref):
    # h_ref:     (TN, Ch_p)    bf16 hidden activations
    # scale_ref: (1, Ch_p)     f32  gamma / sqrt(var + eps)
    # shift_ref: (1, Ch_p)     f32  beta - mean * scale
    # w2t_ref:   (Ch_p, Co_p)  bf16 transposed layer-2 weight (resident, loop-invariant)
    # y_ref:     (TN, Co_p)    bf16 output tile (f32 accumulation inside)
    a = h_ref[...].astype(jnp.float32) * scale_ref[...] + shift_ref[...]
    a = jnp.maximum(a, 0.0)
    y = jnp.dot(a.astype(jnp.bfloat16), w2t_ref[...], preferred_element_type=jnp.float32)
    y_ref[...] = y.astype(y_ref.dtype)


# ---------------------------------------------------------------------------
# Wrapper
# ---------------------------------------------------------------------------
def prediction_mlp_forward(x_nchw, w1, bn_gamma, bn_beta, w2, *, eps=1e-5, tile_n=512):
    """prediction_MLP (conv_ks=1) forward.

    x_nchw:   (B, in_dim, H, W)
    w1:       (hidden_dim, in_dim)   -- 1x1 conv weight of layer1 (squeezed)
    bn_gamma: (hidden_dim,)          -- BatchNorm2d weight
    bn_beta:  (hidden_dim,)          -- BatchNorm2d bias
    w2:       (out_dim, hidden_dim)  -- 1x1 conv weight of layer2 (squeezed)
    returns   (B, out_dim, H, W)     -- float32 (matching the PyTorch module)
    """
    b, cin, hh, ww = x_nchw.shape
    hid = w1.shape[0]
    cout = w2.shape[0]
    n_tok = b * hh * ww

    # --- padding / tiling ---------------------------------------------------
    cin_p = _round_up(cin, 128)
    hid_p = _round_up(hid, 128)
    cout_p = _round_up(cout, 128)

    # Token tile: multiple of 16 (bf16 sublane packing), default 512 (better HBM
    # roofline fraction than 256), clamped for tiny problems.
    tile_n = max(16, min(tile_n, _round_up(n_tok, 16)))
    # v7x megacore: make sure the single "parallel" grid axis has at least two steps
    # so the work can be split across both TensorCores (no effect on v5e/v6e).
    if _round_up(n_tok, tile_n) // tile_n < 2 and tile_n >= 32:
        tile_n = _round_up((tile_n + 1) // 2, 16)
    n_pad = _round_up(n_tok, tile_n)
    num_tiles = n_pad // tile_n

    # NCHW -> tokens (N, Cin).  Cast to bf16 *before* the transpose so the XLA-side
    # layout pass moves half the bytes.  (Keep the surrounding model NHWC to avoid
    # these transposes entirely.)
    x_tok = jnp.transpose(x_nchw.astype(jnp.bfloat16), (0, 2, 3, 1)).reshape(n_tok, cin)
    x_tok = jnp.pad(x_tok, ((0, n_pad - n_tok), (0, cin_p - cin)))

    # Hoist loop-invariant weight prep: pad, transpose, cast to bf16 once.
    w1t = jnp.pad(w1, ((0, hid_p - hid), (0, cin_p - cin))).T.astype(jnp.bfloat16)    # (Cin_p, Ch_p)
    w2t = jnp.pad(w2, ((0, cout_p - cout), (0, hid_p - hid))).T.astype(jnp.bfloat16)  # (Ch_p, Co_p)

    # --- kernel 1: x @ W1^T + partial BN stats -------------------------------
    # NOTE: resident operands (w1t / w2t / bn scale+shift) could use
    # pipeline_mode=pl.Buffered(1) to avoid pointless double-buffering; at tile_n=512
    # both kernels sit around ~9 MiB VMEM at full SimSiam scale, so it is not needed.
    h_tok, stats = pl.pallas_call(
        _proj_stats_kernel,
        out_shape=(
            jax.ShapeDtypeStruct((n_pad, hid_p), jnp.bfloat16),
            jax.ShapeDtypeStruct((num_tiles, 2, hid_p), jnp.float32),
        ),
        grid_spec=pltpu.PrefetchScalarGridSpec(
            num_scalar_prefetch=0,
            grid=(num_tiles,),
            in_specs=[
                pl.BlockSpec((tile_n, cin_p), lambda i: (i, 0)),   # x token tile
                pl.BlockSpec((cin_p, hid_p), lambda i: (0, 0)),    # full W1^T (resident)
            ],
            out_specs=(
                pl.BlockSpec((tile_n, hid_p), lambda i: (i, 0)),
                pl.BlockSpec((1, 2, hid_p), lambda i: (i, 0, 0)),  # per-tile partial stats
            ),
        ),
        compiler_params=pltpu.CompilerParams(dimension_semantics=("parallel",)),
    )(x_tok, w1t)

    # --- BN statistics (training mode: batch stats, biased variance) --------
    # Padded token rows are all-zero and we divide by the true n_tok, so they do not
    # perturb the statistics.
    ch_sum = jnp.sum(stats[:, 0, :], axis=0)                 # (Ch_p,)
    ch_sq = jnp.sum(stats[:, 1, :], axis=0)                  # (Ch_p,)
    mean = ch_sum / float(n_tok)
    var = jnp.maximum(ch_sq / float(n_tok) - mean * mean, 0.0)
    rstd = lax.rsqrt(var + eps)

    gamma_p = jnp.pad(bn_gamma.astype(jnp.float32), (0, hid_p - hid))
    beta_p = jnp.pad(bn_beta.astype(jnp.float32), (0, hid_p - hid))
    bn_scale = (gamma_p * rstd).reshape(1, hid_p).astype(jnp.float32)
    bn_shift = (beta_p - mean * gamma_p * rstd).reshape(1, hid_p).astype(jnp.float32)

    # --- kernel 2: relu(BN(h)) @ W2^T  (bf16 output -> ~45% less kernel-2 HBM) ---
    y_tok = pl.pallas_call(
        _bn_relu_proj_kernel,
        out_shape=jax.ShapeDtypeStruct((n_pad, cout_p), jnp.bfloat16),
        grid_spec=pltpu.PrefetchScalarGridSpec(
            num_scalar_prefetch=0,
            grid=(num_tiles,),
            in_specs=[
                pl.BlockSpec((tile_n, hid_p), lambda i: (i, 0)),   # h token tile
                pl.BlockSpec((1, hid_p), lambda i: (0, 0)),        # bn scale (resident)
                pl.BlockSpec((1, hid_p), lambda i: (0, 0)),        # bn shift (resident)
                pl.BlockSpec((hid_p, cout_p), lambda i: (0, 0)),   # full W2^T (resident)
            ],
            out_specs=pl.BlockSpec((tile_n, cout_p), lambda i: (i, 0)),
        ),
        compiler_params=pltpu.CompilerParams(dimension_semantics=("parallel",)),
    )(h_tok, bn_scale, bn_shift, w2t)

    # tokens -> NCHW (slice off token/channel padding), cast back to f32 at the end
    # so the module-level output dtype matches the PyTorch reference.
    y = y_tok[:n_tok, :cout].reshape(b, hh, ww, cout)
    return jnp.transpose(y, (0, 3, 1, 2)).astype(jnp.float32)


# ---------------------------------------------------------------------------
# Pure-JAX reference (f32 everywhere) mirroring the PyTorch forward
# ---------------------------------------------------------------------------
def _reference_forward(x, w1, gamma, beta, w2, eps=1e-5):
    b, cin, hh, ww = x.shape
    xt = jnp.transpose(x, (0, 2, 3, 1)).reshape(-1, cin)
    h = xt @ w1.T
    mean = jnp.mean(h, axis=0)
    var = jnp.var(h, axis=0)            # biased, as used by BN for normalization
    a = (h - mean) * lax.rsqrt(var + eps) * gamma + beta
    a = jnp.maximum(a, 0.0)
    y = a @ w2.T
    return jnp.transpose(y.reshape(b, hh, ww, -1), (0, 3, 1, 2))


if __name__ == "__main__":
    # Small shapes consistent with the module's bottleneck structure.
    batch, in_dim, hidden_dim, out_dim = 2, 64, 32, 64
    hh = ww = 8

    key = jax.random.PRNGKey(0)
    kx, k1, k2, kg, kb = jax.random.split(key, 5)

    x = jax.random.normal(kx, (batch, in_dim, hh, ww), dtype=jnp.float32)

    # Conv2d(bias=False) weights, squeezed from (out, in, 1, 1) to (out, in).
    s1 = 1.0 / math.sqrt(in_dim)
    w1 = jax.random.uniform(k1, (hidden_dim, in_dim), jnp.float32, minval=-s1, maxval=s1)
    s2 = 1.0 / math.sqrt(hidden_dim)
    w2 = jax.random.uniform(k2, (out_dim, hidden_dim), jnp.float32, minval=-s2, maxval=s2)

    # BatchNorm2d affine params (randomized a bit so the test is non-trivial).
    gamma = jax.random.uniform(kg, (hidden_dim,), jnp.float32, minval=0.8, maxval=1.2)
    beta = 0.1 * jax.random.normal(kb, (hidden_dim,), jnp.float32)

    fwd = jax.jit(prediction_mlp_forward)
    y = fwd(x, w1, gamma, beta, w2)
    y = jax.block_until_ready(y)

    y_ref = _reference_forward(x, w1, gamma, beta, w2)

    assert y.shape == (batch, out_dim, hh, ww)
    assert bool(jnp.all(jnp.isfinite(y)))
    # bf16 MXU inputs + bf16 kernel-2 output with f32 accumulation -> loosened
    # tolerance vs the f32 reference.
    max_err = float(jnp.max(jnp.abs(y - y_ref)))
    assert jnp.allclose(y, y_ref, atol=5e-2, rtol=5e-2), f"max abs err {max_err}"

    print("KERNEL_OK")
</pallas_src>

<mosaic_0001>
module attributes {stable_mosaic.version = 11 : i64} {
  func.func @_proj_stats_kernel(%arg0: i32, %arg1: memref<64x128xbf16, #tpu.memory_space<vmem>>, %arg2: memref<128x128xbf16, #tpu.memory_space<vmem>>, %arg3: memref<64x128xbf16, #tpu.memory_space<vmem>>, %arg4: memref<1x2x128xf32, #tpu.memory_space<vmem>>) attributes {dimension_semantics = [#tpu.dimension_semantics<parallel>], iteration_bounds = array<i64: 2>, scalar_prefetch = 0 : i64, scratch_operands = 0 : i64, tpu.core_type = #tpu.core_type<tc>, window_params = [{transform_indices = @transform_0, window_bounds = array<i64: 64, 128>}, {pipeline_mode = #tpu.pipeline_mode<synchronous>, transform_indices = @transform_1, window_bounds = array<i64: 128, 128>}, {transform_indices = @transform_2, window_bounds = array<i64: 64, 128>}, {transform_indices = @transform_3, window_bounds = array<i64: 1, 2, 128>}]} {
    %c0 = arith.constant 0 : index
    %c0_0 = arith.constant 0 : index
    %0 = vector.load %arg1[%c0, %c0_0] : memref<64x128xbf16, #tpu.memory_space<vmem>>, vector<64x128xbf16>
    %c0_1 = arith.constant 0 : index
    %c0_2 = arith.constant 0 : index
    %1 = vector.load %arg2[%c0_1, %c0_2] : memref<128x128xbf16, #tpu.memory_space<vmem>>, vector<128x128xbf16>
    %cst = arith.constant dense<0.000000e+00> : vector<64x128xf32>
    %2 = tpu.matmul %0, %1, %cst {dimension_numbers = #tpu.dot_dimension_numbers<[1], [0], [0], [1], [0, 0, 1, 1], [], []>} : vector<64x128xbf16>, vector<128x128xbf16>, vector<64x128xf32> -> vector<64x128xf32>
    %3 = arith.truncf %2 : vector<64x128xf32> to vector<64x128xbf16>
    %c0_3 = arith.constant 0 : index
    %c0_4 = arith.constant 0 : index
    %4 = vector.load %arg3[%c0_3, %c0_4] : memref<64x128xbf16, #tpu.memory_space<vmem>>, vector<64x128xbf16>
    tpu.vector_store %arg3[%c0_3, %c0_4], %3 {strides = array<i32>} : memref<64x128xbf16, #tpu.memory_space<vmem>>, vector<64x128xbf16>,
    %cst_5 = arith.constant dense<0.000000e+00> : vector<128xf32>
    %5 = vector.multi_reduction <add>, %2, %cst_5 [0] : vector<64x128xf32> to vector<128xf32>
    %6 = vector.shape_cast %5 : vector<128xf32> to vector<1x128xf32>
    %7 = arith.mulf %2, %2 : vector<64x128xf32>
    %cst_6 = arith.constant dense<0.000000e+00> : vector<128xf32>
    %8 = vector.multi_reduction <add>, %7, %cst_6 [0] : vector<64x128xf32> to vector<128xf32>
    %9 = vector.shape_cast %8 : vector<128xf32> to vector<1x128xf32>
    %10 = tpu.iota {dimensions = array<i32: 0>} : vector<2x128xi32>
    %c0_i32 = arith.constant 0 : i32
    %11 = vector.broadcast %c0_i32 : i32 to vector<2x128xi32>
    %12 = arith.cmpi eq, %10, %11 : vector<2x128xi32>
    %13 = vector.shape_cast %6 : vector<1x128xf32> to vector<1x128xf32>
    %14 = vector.broadcast %13 : vector<1x128xf32> to vector<2x128xf32>
    %15 = vector.shape_cast %9 : vector<1x128xf32> to vector<1x128xf32>
    %16 = vector.broadcast %15 : vector<1x128xf32> to vector<2x128xf32>
    %17 = arith.select %12, %14, %16 : vector<2x128xi1>, vector<2x128xf32>
    %18 = vector.shape_cast %17 : vector<2x128xf32> to vector<1x2x128xf32>
    %c0_7 = arith.constant 0 : index
    %c0_8 = arith.constant 0 : index
    %c0_9 = arith.constant 0 : index
    %19 = vector.load %arg4[%c0_7, %c0_8, %c0_9] : memref<1x2x128xf32, #tpu.memory_space<vmem>>, vector<1x2x128xf32>
    tpu.vector_store %arg4[%c0_7, %c0_8, %c0_9], %18 {strides = array<i32>} : memref<1x2x128xf32, #tpu.memory_space<vmem>>, vector<1x2x128xf32>,
    return
  }
  func.func @transform_0(%arg0: i32) -> (i32, i32) {
    %c0_i32 = arith.constant 0 : i32
    %c0_i32_0 = arith.constant 0 : i32
    return %arg0, %c0_i32 : i32, i32
  }
  func.func @transform_1(%arg0: i32) -> (i32, i32) {
    %c0_i32 = arith.constant 0 : i32
    %c0_i32_0 = arith.constant 0 : i32
    %c0_i32_1 = arith.constant 0 : i32
    return %c0_i32, %c0_i32_0 : i32, i32
  }
  func.func @transform_2(%arg0: i32) -> (i32, i32) {
    %c0_i32 = arith.constant 0 : i32
    %c0_i32_0 = arith.constant 0 : i32
    return %arg0, %c0_i32 : i32, i32
  }
  func.func @transform_3(%arg0: i32) -> (i32, i32, i32) {
    %c0_i32 = arith.constant 0 : i32
    %c0_i32_0 = arith.constant 0 : i32
    %c0_i32_1 = arith.constant 0 : i32
    return %arg0, %c0_i32, %c0_i32_0 : i32, i32, i32
  }
}

module attributes {stable_mosaic.version = 11 : i64} {
  func.func @_bn_relu_proj_kernel(%arg0: i32, %arg1: memref<64x128xbf16, #tpu.memory_space<vmem>>, %arg2: memref<1x128xf32, #tpu.memory_space<vmem>>, %arg3: memref<1x128xf32, #tpu.memory_space<vmem>>, %arg4: memref<128x128xbf16, #tpu.memory_space<vmem>>, %arg5: memref<64x128xbf16, #tpu.memory_space<vmem>>) attributes {dimension_semantics = [#tpu.dimension_semantics<parallel>], iteration_bounds = array<i64: 2>, scalar_prefetch = 0 : i64, scratch_operands = 0 : i64, tpu.core_type = #tpu.core_type<tc>, window_params = [{transform_indices = @transform_0, window_bounds = array<i64: 64, 128>}, {pipeline_mode = #tpu.pipeline_mode<synchronous>, transform_indices = @transform_1, window_bounds = array<i64: 1, 128>}, {pipeline_mode = #tpu.pipeline_mode<synchronous>, transform_indices = @transform_2, window_bounds = array<i64: 1, 128>}, {pipeline_mode = #tpu.pipeline_mode<synchronous>, transform_indices = @transform_3, window_bounds = array<i64: 128, 128>}, {transform_indices = @transform_4, window_bounds = array<i64: 64, 128>}]} {
    %c0 = arith.constant 0 : index
    %c0_0 = arith.constant 0 : index
    %0 = vector.load %arg1[%c0, %c0_0] : memref<64x128xbf16, #tpu.memory_space<vmem>>, vector<64x128xbf16>
    %1 = arith.extf %0 : vector<64x128xbf16> to vector<64x128xf32>
    %c0_1 = arith.constant 0 : index
    %c0_2 = arith.constant 0 : index
    %2 = vector.load %arg2[%c0_1, %c0_2] : memref<1x128xf32, #tpu.memory_space<vmem>>, vector<1x128xf32>
    %3 = vector.broadcast %2 : vector<1x128xf32> to vector<64x128xf32>
    %4 = arith.mulf %1, %3 : vector<64x128xf32>
    %c0_3 = arith.constant 0 : index
    %c0_4 = arith.constant 0 : index
    %5 = vector.load %arg3[%c0_3, %c0_4] : memref<1x128xf32, #tpu.memory_space<vmem>>, vector<1x128xf32>
    %6 = vector.broadcast %5 : vector<1x128xf32> to vector<64x128xf32>
    %7 = arith.addf %4, %6 : vector<64x128xf32>
    %cst = arith.constant 0.000000e+00 : f32
    %8 = vector.broadcast %cst : f32 to vector<64x128xf32>
    %9 = arith.maximumf %7, %8 : vector<64x128xf32>
    %10 = arith.truncf %9 : vector<64x128xf32> to vector<64x128xbf16>
    %c0_5 = arith.constant 0 : index
    %c0_6 = arith.constant 0 : index
    %11 = vector.load %arg4[%c0_5, %c0_6] : memref<128x128xbf16, #tpu.memory_space<vmem>>, vector<128x128xbf16>
    %cst_7 = arith.constant dense<0.000000e+00> : vector<64x128xf32>
    %12 = tpu.matmul %10, %11, %cst_7 {dimension_numbers = #tpu.dot_dimension_numbers<[1], [0], [0], [1], [0, 0, 1, 1], [], []>} : vector<64x128xbf16>, vector<128x128xbf16>, vector<64x128xf32> -> vector<64x128xf32>
    %13 = arith.truncf %12 : vector<64x128xf32> to vector<64x128xbf16>
    %c0_8 = arith.constant 0 : index
    %c0_9 = arith.constant 0 : index
    %14 = vector.load %arg5[%c0_8, %c0_9] : memref<64x128xbf16, #tpu.memory_space<vmem>>, vector<64x128xbf16>
    tpu.vector_store %arg5[%c0_8, %c0_9], %13 {strides = array<i32>} : memref<64x128xbf16, #tpu.memory_space<vmem>>, vector<64x128xbf16>,
    return
  }
  func.func @transform_0(%arg0: i32) -> (i32, i32) {
    %c0_i32 = arith.constant 0 : i32
    %c0_i32_0 = arith.constant 0 : i32
    return %arg0, %c0_i32 : i32, i32
  }
  func.func @transform_1(%arg0: i32) -> (i32, i32) {
    %c0_i32 = arith.constant 0 : i32
    %c0_i32_0 = arith.constant 0 : i32
    %c0_i32_1 = arith.constant 0 : i32
    return %c0_i32, %c0_i32_0 : i32, i32
  }
  func.func @transform_2(%arg0: i32) -> (i32, i32) {
    %c0_i32 = arith.constant 0 : i32
    %c0_i32_0 = arith.constant 0 : i32
    %c0_i32_1 = arith.constant 0 : i32
    return %c0_i32, %c0_i32_0 : i32, i32
  }
  func.func @transform_3(%arg0: i32) -> (i32, i32) {
    %c0_i32 = arith.constant 0 : i32
    %c0_i32_0 = arith.constant 0 : i32
    %c0_i32_1 = arith.constant 0 : i32
    return %c0_i32, %c0_i32_0 : i32, i32
  }
  func.func @transform_4(%arg0: i32) -> (i32, i32) {
    %c0_i32 = arith.constant 0 : i32
    %c0_i32_0 = arith.constant 0 : i32
    return %arg0, %c0_i32 : i32, i32
  }
}

</mosaic_0001>

<llo_original>
// kernel: prediction_mlp_forward.3
$region0: #{prediction_mlp_forward.3}
  #allocation0 [shape = 'u32[]', space=smem, size = 0x4, offset = 0x4, fixed_abs, tag = 'smem constant byte address 0x4 - core index']
  #allocation1 [shape = 'u32[144,128]{1,0:T(1,128)}', space=vmem, size = 0x12000, scoped, tag = 'internal scratch']
  %s0 = inlined_call_operand.vmem [shape: bf16[128,128], index: 0, kind: input, shape index: {}]
  %s1 = inlined_call_operand.vmem [shape: f32[1,128], index: 1, kind: input, shape index: {}]
  %s2 = inlined_call_operand.vmem [shape: f32[1,128], index: 2, kind: input, shape index: {}]
  %s3 = inlined_call_operand.vmem [shape: bf16[128,128], index: 3, kind: input, shape index: {}]
  %s4 = inlined_call_operand.vmem [shape: bf16[128,128], index: 4, kind: output, shape index: {}]
  %s5 = sld [smem:[#allocation0]]
  $region49: #{prediction_mlp_forward.3} parent=0
    _
  %s7 = ssub.s32 1, %s5
  %s8 = scalar_select 0, %s7, %s5
  loop: start=0, step=1, limit=4
  $region2: #{prediction_mlp_forward.3} parent=0 // loop_pre_header
    _
  $region3: #{prediction_mlp_forward.3} parent=0 // loop_header
    %s10 = sphi 0, %s14
    %p11 = scmp.ge.s32.totalorder %s10, 4
    %s20 = sphi 0, %s22
    %s23 = sphi 0, %s20
    %s24 = sphi 0, %s23
    %s40 = sphi 0, %s24
    %s44 = sphi 0, %s44
    %s46 = sphi 0, %s44
    %s47 = sphi 0, %s46
    %s61 = sphi 0, %s47
    %s65 = sphi 0, %s65
    %s67 = sphi 0, %s65
    %s68 = sphi 0, %s67
    %s82 = sphi 0, %s68
    %s86 = sphi 0, %s86
    %s88 = sphi 0, %s86
    %s89 = sphi 0, %s88
    %s103 = sphi 0, %s89
    %s109 = sphi 0, %s111
    %s112 = sphi 0, %s109
    %s113 = sphi 0, %s112
    %s129 = sphi 0, %s113
  $region4: #{prediction_mlp_forward.3} parent=0 // loop_header_branch
    %13 = sbr.rel (%p11) target = $region8
  $region5: #{prediction_mlp_forward.3} parent=0 // loop_body
    %s15 = ssub.s32 %s10, 1
    %s16 = ssub.s32 %s10, 2
    %s17 = sadd.s32 %s10, 1
    %s18 = ssub.s32 %s10, %s17
    %p19 = scmp.eq.s32.totalorder %s18, 0
    %s21 = sadd.s32 %s20, 1
    %s22 = scalar_select %p19, %s20, %s21
    %p25 = pneg %p19
    %p26 = scmp.eq.s32.totalorder %s10, 1
    %p27 = por %p25, %p26
    %p28 = scmp.ne.s32.totalorder %s20, %s23
    %p29 = scmp.eq.s32.totalorder %s10, 0
    %p30 = por %p28, %p29
    %p31 = scmp.ne.s32.totalorder %s20, %s23
    %p32 = scmp.eq.s32.totalorder %s15, 1
    %p33 = por %p31, %p32
    %p34 = scmp.ne.s32.totalorder %s23, %s24
    %p35 = scmp.eq.s32.totalorder %s15, 0
    %p36 = por %p34, %p35
    %p37 = scmp.ne.s32.totalorder %s23, %s24
    %p38 = scmp.eq.s32.totalorder %s16, 1
    %p39 = por %p37, %p38
    %p41 = scmp.ne.s32.totalorder %s24, %s40
    %p42 = scmp.eq.s32.totalorder %s16, 0
    %p43 = por %p41, %p42
    %s45 = sadd.s32 %s44, 1
    %p48 = scmp.eq.s32.totalorder %s10, 1
    %p49 = scmp.ne.s32.totalorder %s44, %s46
    %p50 = scmp.eq.s32.totalorder %s10, 0
    %p51 = por %p49, %p50
    %p52 = scmp.ne.s32.totalorder %s44, %s46
    %p53 = scmp.eq.s32.totalorder %s15, 1
    %p54 = por %p52, %p53
    %p55 = scmp.ne.s32.totalorder %s46, %s47
    %p56 = scmp.eq.s32.totalorder %s15, 0
    %p57 = por %p55, %p56
    %p58 = scmp.ne.s32.totalorder %s46, %s47
    %p59 = scmp.eq.s32.totalorder %s16, 1
    %p60 = por %p58, %p59
    %p62 = scmp.ne.s32.totalorder %s47, %s61
    %p63 = scmp.eq.s32.totalorder %s16, 0
    %p64 = por %p62, %p63
    %s66 = sadd.s32 %s65, 1
    %p69 = scmp.eq.s32.totalorder %s10, 1
    %p70 = scmp.ne.s32.totalorder %s65, %s67
    %p71 = scmp.eq.s32.totalorder %s10, 0
    %p72 = por %p70, %p71
    %p73 = scmp.ne.s32.totalorder %s65, %s67
    %p74 = scmp.eq.s32.totalorder %s15, 1
    %p75 = por %p73, %p74
    %p76 = scmp.ne.s32.totalorder %s67, %s68
    %p77 = scmp.eq.s32.totalorder %s15, 0
    %p78 = por %p76, %p77
    %p79 = scmp.ne.s32.totalorder %s67, %s68
    %p80 = scmp.eq.s32.totalorder %s16, 1
    %p81 = por %p79, %p80
    %p83 = scmp.ne.s32.totalorder %s68, %s82
    %p84 = scmp.eq.s32.totalorder %s16, 0
    %p85 = por %p83, %p84
    %s87 = sadd.s32 %s86, 1
    %p90 = scmp.eq.s32.totalorder %s10, 1
    %p91 = scmp.ne.s32.totalorder %s86, %s88
    %p92 = scmp.eq.s32.totalorder %s10, 0
    %p93 = por %p91, %p92
    %p94 = scmp.ne.s32.totalorder %s86, %s88
    %p95 = scmp.eq.s32.totalorder %s15, 1
    %p96 = por %p94, %p95
    %p97 = scmp.ne.s32.totalorder %s88, %s89
    %p98 = scmp.eq.s32.totalorder %s15, 0
    %p99 = por %p97, %p98
    %p100 = scmp.ne.s32.totalorder %s88, %s89
    %p101 = scmp.eq.s32.totalorder %s16, 1
    %p102 = por %p100, %p101
    %p104 = scmp.ne.s32.totalorder %s89, %s103
    %p105 = scmp.eq.s32.totalorder %s16, 0
    %p106 = por %p104, %p105
    %s107 = ssub.s32 %s10, %s17
    %p108 = scmp.eq.s32.totalorder %s107, 0
    %s110 = sadd.s32 %s109, 1
    %s111 = scalar_select %p108, %s109, %s110
    %p114 = pneg %p108
    %p115 = scmp.eq.s32.totalorder %s10, 1
    %p116 = por %p114, %p115
    %p117 = scmp.ne.s32.totalorder %s109, %s112
    %p118 = scmp.eq.s32.totalorder %s10, 0
    %p119 = por %p117, %p118
    %p120 = scmp.ne.s32.totalorder %s109, %s112
    %p121 = scmp.eq.s32.totalorder %s15, 1
    %p122 = por %p120, %p121
    %p123 = scmp.ne.s32.totalorder %s112, %s113
    %p124 = scmp.eq.s32.totalorder %s15, 0
    %p125 = por %p123, %p124
    %p126 = scmp.ne.s32.totalorder %s112, %s113
    %p127 = scmp.eq.s32.totalorder %s16, 1
    %p128 = por %p126, %p127
    %p130 = scmp.ne.s32.totalorder %s113, %s129
    %p131 = scmp.eq.s32.totalorder %s16, 0
    %p132 = por %p130, %p131
    %p133 = scmp.le.s32.totalorder 1, %s10
    %p134 = scmp.lt.s32.totalorder %s10, 3
    %p135 = pnand %p133, %p134
    %p136 = pneg %p135
    // Predicated region
    $region9: #{prediction_mlp_forward.3} parent=5 // pred_check
      _
    $region10: #{prediction_mlp_forward.3} parent=5 // pred_check_branch
      %138 = sbr.rel (%p135) target = $region12
    $region11: #{prediction_mlp_forward.3} parent=5 // pred_region
      %s139 = ssub.s32 %s10, 1
      // Predicated region
      $region13: #{prediction_mlp_forward.3} parent=11 // pred_check
        %p140 = pneg %p57
      $region14: #{prediction_mlp_forward.3} parent=11 // pred_check_branch
        %142 = sbr.rel (%p140) target = $region16
      $region15: #{prediction_mlp_forward.3} parent=11 // pred_region
        _
      $region16: #{prediction_mlp_forward.3} parent=11 // pred_fallthru
        _
      // Predicated region
      $region17: #{prediction_mlp_forward.3} parent=11 // pred_check
        %p143 = pneg %p78
      $region18: #{prediction_mlp_forward.3} parent=11 // pred_check_branch
        %145 = sbr.rel (%p143) target = $region20
      $region19: #{prediction_mlp_forward.3} parent=11 // pred_region
        _
      $region20: #{prediction_mlp_forward.3} parent=11 // pred_fallthru
        _
      // Predicated region
      $region21: #{prediction_mlp_forward.3} parent=11 // pred_check
        %p146 = pneg %p99
      $region22: #{prediction_mlp_forward.3} parent=11 // pred_check_branch
        %148 = sbr.rel (%p146) target = $region24
      $region23: #{prediction_mlp_forward.3} parent=11 // pred_region
        _
      $region24: #{prediction_mlp_forward.3} parent=11 // pred_fallthru
        _
    $region12: #{prediction_mlp_forward.3} parent=5 // pred_fallthru
      _
    %p149 = scmp.lt.s32.totalorder %s10, 2
    // Predicated region
    $region25: #{prediction_mlp_forward.3} parent=5 // pred_check
      %p150 = pneg %p149
    $region26: #{prediction_mlp_forward.3} parent=5 // pred_check_branch
      %152 = sbr.rel (%p150) target = $region28
    $region27: #{prediction_mlp_forward.3} parent=5 // pred_region
      // Predicated region
      $region29: #{prediction_mlp_forward.3} parent=27 // pred_check
        %p153 = pneg %p30
      $region30: #{prediction_mlp_forward.3} parent=27 // pred_check_branch
        %155 = sbr.rel (%p153) target = $region32
      $region31: #{prediction_mlp_forward.3} parent=27 // pred_region
        %s156 = smul.u32 8, %s10
        %p157 = scmp.lt.s32.totalorder %s156, 15
        %s158 = scalar_select %p157, %s156, 15
        %s159 = smul.addr %s158, 4
        %s160 = scalar_lea.vmem %s0, %s159
        %s161 = smul.u32 8, %s10
      $region32: #{prediction_mlp_forward.3} parent=27 // pred_fallthru
        _
    $region28: #{prediction_mlp_forward.3} parent=5 // pred_fallthru
      _
    %p162 = scmp.le.s32.totalorder 1, %s10
    %p163 = scmp.lt.s32.totalorder %s10, 3
    %p164 = pnand %p162, %p163
    %p165 = pneg %p164
    // Predicated region
    $region33: #{prediction_mlp_forward.3} parent=5 // pred_check
      _
    $region34: #{prediction_mlp_forward.3} parent=5 // pred_check_branch
      %167 = sbr.rel (%p164) target = $region36
    $region35: #{prediction_mlp_forward.3} parent=5 // pred_region
      %s168 = ssub.s32 %s10, 1
      %s169 = smul.u32 8, %s15
      %p170 = scmp.lt.s32.totalorder %s169, 15
      %s171 = scalar_select %p170, %s169, 15
      %s172 = smul.addr %s171, 4
      %s173 = scalar_lea.vmem %s0, %s172
      %p174 = pneg %p36
      %p175 = pneg %p33
      %p176 = pneg %p57
      %p177 = pneg %p54
      %p178 = pneg %p78
      %p179 = pneg %p75
      %p180 = pneg %p99
      %p181 = pneg %p96
      %p182 = pneg %p125
      %p183 = pneg %p122
      %s184 = smul.u32 8, %s15
      %p185 = scmp.lt.s32.totalorder %s184, 15
      %s186 = scalar_select %p185, %s184, 15
      %s187 = smul.addr %s186, 4
      %s188 = scalar_lea.vmem %s4, %s187
      %s189 = smul.u32 8, %s15
      %p190 = scmp.lt.s32.totalorder %s189, 15
      %s191 = scalar_select %p190, %s189, 15
      %s192 = smul.addr %s191, 4
      %s193 = scalar_lea.vmem %s0, %s192
      %s194 = smul.u32 8, %s15
      %s195 = smul.u32 8, %s15
      %p196 = scmp.lt.s32.totalorder %s195, 15
      %s197 = scalar_select %p196, %s195, 15
      %s198 = smul.addr %s197, 4
      %s199 = scalar_lea.vmem %s4, %s198
      %s200 = smul.u32 8, %s15
      %v202 = vld [vmem:[%s193] sm:$0xf]
      %v203 = vld [vmem:[%s193 + $0x4] sm:$0xf]
      %v204 = vld [vmem:[%s193 + $0x8] sm:$0xf]
      %v205 = vld [vmem:[%s193 + $0xc] sm:$0xf]
      %v206 = vld [vmem:[%s193 + $0x10] sm:$0xf]
      %v207 = vld [vmem:[%s193 + $0x14] sm:$0xf]
      %v208 = vld [vmem:[%s193 + $0x18] sm:$0xf]
      %v209 = vld [vmem:[%s193 + $0x1c] sm:$0xf]
      %v210 = vunpack.c.l.bf16 %v202
      %v211 = vunpack.c.l.bf16 %v203
      %v212 = vunpack.c.l.bf16 %v204
      %v213 = vunpack.c.l.bf16 %v205
      %v214 = vunpack.c.l.bf16 %v206
      %v215 = vunpack.c.l.bf16 %v207
      %v216 = vunpack.c.l.bf16 %v208
      %v217 = vunpack.c.l.bf16 %v209
      %v218 = vld [vmem:[%s1] sm:$0x1]
      %v220 = vlaneseq
      %v221 = vshrl.u32 %v220, 7
      %v222 = vsub.s32 0, %v221
      %v223 = vrot.slane %v218, %v222
      %v225 = vmul.f32 %v210, %v223
      %v226 = vmul.f32 %v211, %v223
      %v227 = vmul.f32 %v212, %v223
      %v228 = vmul.f32 %v213, %v223
      %v229 = vmul.f32 %v214, %v223
      %v230 = vmul.f32 %v215, %v223
      %v231 = vmul.f32 %v216, %v223
      %v232 = vmul.f32 %v217, %v223
      %v233 = vld [vmem:[%s2] sm:$0x1]
      %v235 = vlaneseq
      %v236 = vshrl.u32 %v235, 7
      %v237 = vsub.s32 0, %v236
      %v238 = vrot.slane %v233, %v237
      %v240 = vadd.f32 %v225, %v238
      %v241 = vadd.f32 %v226, %v238
      %v242 = vadd.f32 %v227, %v238
      %v243 = vadd.f32 %v228, %v238
      %v244 = vadd.f32 %v229, %v238
      %v245 = vadd.f32 %v230, %v238
      %v246 = vadd.f32 %v231, %v238
      %v247 = vadd.f32 %v232, %v238
      %v248 = vmax.f32 %v240, 0.0
      %v249 = vmax.f32 %v241, 0.0
      %v250 = vmax.f32 %v242, 0.0
      %v251 = vmax.f32 %v243, 0.0
      %v252 = vmax.f32 %v244, 0.0
      %v253 = vmax.f32 %v245, 0.0
      %v254 = vmax.f32 %v246, 0.0
      %v255 = vmax.f32 %v247, 0.0
      %v256 = vpack.c.bf16 %v249, %v248
      %v257 = vpack.c.bf16 %v251, %v250
      %v258 = vpack.c.bf16 %v253, %v252
      %v259 = vpack.c.bf16 %v255, %v254
      %v260 = vld [vmem:[%s3] sm:$0xf]
      %v261 = vld [vmem:[%s3 + $0x4] sm:$0xf]
      %v262 = vld [vmem:[%s3 + $0x8] sm:$0xf]
      %v263 = vld [vmem:[%s3 + $0xc] sm:$0xf]
      %v264 = vld [vmem:[%s3 + $0x10] sm:$0xf]
      %v265 = vld [vmem:[%s3 + $0x14] sm:$0xf]
      %v266 = vld [vmem:[%s3 + $0x18] sm:$0xf]
      %v267 = vld [vmem:[%s3 + $0x1c] sm:$0xf]
      %v268 = vld [vmem:[%s3 + $0x20] sm:$0xf]
      %v269 = vld [vmem:[%s3 + $0x24] sm:$0xf]
      %v270 = vld [vmem:[%s3 + $0x28] sm:$0xf]
      %v271 = vld [vmem:[%s3 + $0x2c] sm:$0xf]
      %v272 = vld [vmem:[%s3 + $0x30] sm:$0xf]
      %v273 = vld [vmem:[%s3 + $0x34] sm:$0xf]
      %v274 = vld [vmem:[%s3 + $0x38] sm:$0xf]
      %v275 = vld [vmem:[%s3 + $0x3c] sm:$0xf]
      %v292 = vunpack.c.l.b16 %v260
      %v293 = vunpack.c.l.b16 %v261
      %v294 = vunpack.c.l.b16 %v262
      %v295 = vunpack.c.l.b16 %v263
      %v296 = vunpack.c.l.b16 %v264
      %v297 = vunpack.c.l.b16 %v265
      %v298 = vunpack.c.l.b16 %v266
      %v299 = vunpack.c.l.b16 %v267
      %v300 = vunpack.c.l.b16 %v268
      %v301 = vunpack.c.l.b16 %v269
      %v302 = vunpack.c.l.b16 %v270
      %v303 = vunpack.c.l.b16 %v271
      %v304 = vunpack.c.l.b16 %v272
      %v305 = vunpack.c.l.b16 %v273
      %v306 = vunpack.c.l.b16 %v274
      %v307 = vunpack.c.l.b16 %v275
      %v308 = vpack.c.b16 %v293, %v292
      %v309 = vpack.c.b16 %v295, %v294
      %v310 = vpack.c.b16 %v297, %v296
      %v311 = vpack.c.b16 %v299, %v298
      %v312 = vpack.c.b16 %v301, %v300
      %v313 = vpack.c.b16 %v303, %v302
      %v314 = vpack.c.b16 %v305, %v304
      %v315 = vpack.c.b16 %v307, %v306
      %324 = vmatprep.subr.bf16.mxu0 0
      %325 = vmatpush1.bf16.msra.mxu0 %v315
      %326 = vmatprep.subr.bf16.mxu0 0
      %327 = vmatpush1.bf16.msra.mxu0 %v314
      %328 = vmatprep.subr.bf16.mxu0 0
      %329 = vmatpush1.bf16.msra.mxu0 %v313
      %330 = vmatprep.subr.bf16.mxu0 0
      %331 = vmatpush1.bf16.msra.mxu0 %v312
      %332 = vmatprep.subr.bf16.mxu0 0
      %333 = vmatpush1.bf16.msra.mxu0 %v311
      %334 = vmatprep.subr.bf16.mxu0 0
      %335 = vmatpush1.bf16.msra.mxu0 %v310
      %336 = vmatprep.subr.bf16.mxu0 0
      %337 = vmatpush1.bf16.msra.mxu0 %v309
      %338 = vmatprep.subr.bf16.mxu0 0
      %339 = vmatpush1.bf16.msra.mxu0 %v308
      %340 = vmatprep.subr.bf16.mxu0 0
      %341 = vmatpush2.bf16.msra.mxu0 0
      %342 = vmatprep.subr.bf16.mxu0 0
      %343 = vmatpush2.bf16.msra.mxu0 0
      %344 = vmatprep.subr.bf16.mxu0 0
      %345 = vmatpush2.bf16.msra.mxu0 0
      %346 = vmatprep.subr.bf16.mxu0 0
      %347 = vmatpush2.bf16.msra.mxu0 0
      %348 = vmatprep.subr.bf16.mxu0 0
      %349 = vmatpush2.bf16.msra.mxu0 0
      %350 = vmatprep.subr.bf16.mxu0 0
      %351 = vmatpush2.bf16.msra.mxu0 0
      %352 = vmatprep.subr.bf16.mxu0 0
      %353 = vmatpush2.bf16.msra.mxu0 0
      %354 = vmatprep.subr.bf16.mxu0 0
      %355 = vmatpush2.bf16.msra.mxu0 0
      %356 = vmatprep.mubr.bf16.mxu0 0
      %357 = vmatmul.mubr.bf16.gmra.mxu0 %v256
      %v358 = vpop.f32.mrf.mxu0
      %v359 = vadd.f32 0.0, %v358
      %v360 = vpop.f32.mrf.mxu0
      %v361 = vpop.f32.mrf.mxu0
      %v362 = vadd.f32 0.0, %v361
      %v363 = vpop.f32.mrf.mxu0
      %364 = vmatprep.mubr.bf16.mxu0 0
      %365 = vmatmul.mubr.bf16.gmra.mxu0 %v257
      %v366 = vpop.f32.mrf.mxu0
      %v367 = vadd.f32 0.0, %v366
      %v368 = vpop.f32.mrf.mxu0
      %v369 = vpop.f32.mrf.mxu0
      %v370 = vadd.f32 0.0, %v369
      %v371 = vpop.f32.mrf.mxu0
      %372 = vmatprep.mubr.bf16.mxu0 0
      %373 = vmatmul.mubr.bf16.gmra.mxu0 %v258
      %v374 = vpop.f32.mrf.mxu0
      %v375 = vadd.f32 0.0, %v374
      %v376 = vpop.f32.mrf.mxu0
      %v377 = vpop.f32.mrf.mxu0
      %v378 = vadd.f32 0.0, %v377
      %v379 = vpop.f32.mrf.mxu0
      %380 = vmatprep.mubr.bf16.mxu0 0
      %381 = vmatmul.mubr.bf16.gmra.mxu0 %v259
      %v382 = vpop.f32.mrf.mxu0
      %v383 = vadd.f32 0.0, %v382
      %v384 = vpop.f32.mrf.mxu0
      %v385 = vpop.f32.mrf.mxu0
      %v386 = vadd.f32 0.0, %v385
      %v387 = vpop.f32.mrf.mxu0
      %388 = vdwg.mxu0
      %v389 = vpack.c.bf16 %v362, %v359
      %v390 = vpack.c.bf16 %v370, %v367
      %v391 = vpack.c.bf16 %v378, %v375
      %v392 = vpack.c.bf16 %v386, %v383
      %v397 = vunpack.c.l.b16 %v389
      %v398 = vunpack.c.h.b16 %v389
      %v399 = vunpack.c.l.b16 %v390
      %v400 = vunpack.c.h.b16 %v390
      %v401 = vunpack.c.l.b16 %v391
      %v402 = vunpack.c.h.b16 %v391
      %v403 = vunpack.c.l.b16 %v392
      %v404 = vunpack.c.h.b16 %v392
      %v405 = vpack.c.b16 %v397, %v397
      %v406 = vpack.c.b16 %v398, %v398
      %v407 = vpack.c.b16 %v399, %v399
      %v408 = vpack.c.b16 %v400, %v400
      %v409 = vpack.c.b16 %v401, %v401
      %v410 = vpack.c.b16 %v402, %v402
      %v411 = vpack.c.b16 %v403, %v403
      %v412 = vpack.c.b16 %v404, %v404
      %421 = vst [vmem:[%s199] sm:$0xf] %v405
      %422 = vst [vmem:[%s199 + $0x4] sm:$0xf] %v406
      %423 = vst [vmem:[%s199 + $0x8] sm:$0xf] %v407
      %424 = vst [vmem:[%s199 + $0xc] sm:$0xf] %v408
      %425 = vst [vmem:[%s199 + $0x10] sm:$0xf] %v409
      %426 = vst [vmem:[%s199 + $0x14] sm:$0xf] %v410
      %427 = vst [vmem:[%s199 + $0x18] sm:$0xf] %v411
      %428 = vst [vmem:[%s199 + $0x1c] sm:$0xf] %v412
      %s429 = smul.u32 8, %s15
      %p430 = scmp.lt.s32.totalorder %s429, 15
      %s431 = scalar_select %p430, %s429, 15
      %s432 = smul.addr %s431, 4
      %s433 = scalar_lea.vmem %s4, %s432
      // Predicated region
      $region37: #{prediction_mlp_forward.3} parent=35 // pred_check
        %p434 = pneg %p122
      $region38: #{prediction_mlp_forward.3} parent=35 // pred_check_branch
        %436 = sbr.rel (%p434) target = $region40
      $region39: #{prediction_mlp_forward.3} parent=35 // pred_region
        %s437 = smul.u32 8, %s15
      $region40: #{prediction_mlp_forward.3} parent=35 // pred_fallthru
        _
    $region36: #{prediction_mlp_forward.3} parent=5 // pred_fallthru
      _
    %p438 = scmp.le.s32.totalorder 2, %s10
    // Predicated region
    $region41: #{prediction_mlp_forward.3} parent=5 // pred_check
      %p439 = pneg %p438
    $region42: #{prediction_mlp_forward.3} parent=5 // pred_check_branch
      %441 = sbr.rel (%p439) target = $region44
    $region43: #{prediction_mlp_forward.3} parent=5 // pred_region
      %s442 = ssub.s32 %s10, 2
      // Predicated region
      $region45: #{prediction_mlp_forward.3} parent=43 // pred_check
        %p443 = pneg %p128
      $region46: #{prediction_mlp_forward.3} parent=43 // pred_check_branch
        %445 = sbr.rel (%p443) target = $region48
      $region47: #{prediction_mlp_forward.3} parent=43 // pred_region
        %s446 = smul.u32 8, %s16
        %p447 = scmp.lt.s32.totalorder %s446, 15
        %s448 = scalar_select %p447, %s446, 15
        %s449 = smul.addr %s448, 4
        %s450 = scalar_lea.vmem %s4, %s449
      $region48: #{prediction_mlp_forward.3} parent=43 // pred_fallthru
        _
    $region44: #{prediction_mlp_forward.3} parent=5 // pred_fallthru
      _
  $region6: #{prediction_mlp_forward.3} parent=0 // loop_footer
    %s14 = sadd.s32 1, %s10
  $region7: #{prediction_mlp_forward.3} parent=0 // loop_footer_branch
    %9 = sbr.rel target = $region3
  $region8: #{prediction_mlp_forward.3} parent=0 // loop_exit
    _

// kernel: prediction_mlp_forward.2
$region0: #{prediction_mlp_forward.2}
  #allocation0 [shape = 'u32[]', space=smem, size = 0x4, offset = 0x4, fixed_abs, tag = 'smem constant byte address 0x4 - core index']
  #allocation1 [shape = 'u32[144,128]{1,0:T(1,128)}', space=vmem, size = 0x12000, scoped, tag = 'internal scratch']
  %s0 = inlined_call_operand.vmem [shape: bf16[128,128], index: 0, kind: input, shape index: {}]
  %s1 = inlined_call_operand.vmem [shape: bf16[128,128], index: 1, kind: input, shape index: {}]
  %s2 = inlined_call_operand.vmem [shape: bf16[128,128], index: 2, kind: output, shape index: {0}]
  %s3 = inlined_call_operand.vmem [shape: f32[2,2,128], index: 3, kind: output, shape index: {1}]
  %4 = xla_tuple %s2, %s3
  %s5 = sld [smem:[#allocation0]]
  $region49: #{prediction_mlp_forward.2} parent=0
    _
  %s7 = ssub.s32 1, %s5
  %s8 = scalar_select 0, %s7, %s5
  loop: start=0, step=1, limit=4
  $region2: #{prediction_mlp_forward.2} parent=0 // loop_pre_header
    _
  $region3: #{prediction_mlp_forward.2} parent=0 // loop_header
    %s10 = sphi 0, %s14
    %p11 = scmp.ge.s32.totalorder %s10, 4
    %s20 = sphi 0, %s22
    %s23 = sphi 0, %s20
    %s24 = sphi 0, %s23
    %s40 = sphi 0, %s24
    %s44 = sphi 0, %s44
    %s46 = sphi 0, %s44
    %s47 = sphi 0, %s46
    %s61 = sphi 0, %s47
    %s67 = sphi 0, %s69
    %s70 = sphi 0, %s67
    %s71 = sphi 0, %s70
    %s87 = sphi 0, %s71
    %s93 = sphi 0, %s95
    %s96 = sphi 0, %s93
    %s97 = sphi 0, %s96
    %s113 = sphi 0, %s97
  $region4: #{prediction_mlp_forward.2} parent=0 // loop_header_branch
    %13 = sbr.rel (%p11) target = $region8
  $region5: #{prediction_mlp_forward.2} parent=0 // loop_body
    %s15 = ssub.s32 %s10, 1
    %s16 = ssub.s32 %s10, 2
    %s17 = sadd.s32 %s10, 1
    %s18 = ssub.s32 %s10, %s17
    %p19 = scmp.eq.s32.totalorder %s18, 0
    %s21 = sadd.s32 %s20, 1
    %s22 = scalar_select %p19, %s20, %s21
    %p25 = pneg %p19
    %p26 = scmp.eq.s32.totalorder %s10, 1
    %p27 = por %p25, %p26
    %p28 = scmp.ne.s32.totalorder %s20, %s23
    %p29 = scmp.eq.s32.totalorder %s10, 0
    %p30 = por %p28, %p29
    %p31 = scmp.ne.s32.totalorder %s20, %s23
    %p32 = scmp.eq.s32.totalorder %s15, 1
    %p33 = por %p31, %p32
    %p34 = scmp.ne.s32.totalorder %s23, %s24
    %p35 = scmp.eq.s32.totalorder %s15, 0
    %p36 = por %p34, %p35
    %p37 = scmp.ne.s32.totalorder %s23, %s24
    %p38 = scmp.eq.s32.totalorder %s16, 1
    %p39 = por %p37, %p38
    %p41 = scmp.ne.s32.totalorder %s24, %s40
    %p42 = scmp.eq.s32.totalorder %s16, 0
    %p43 = por %p41, %p42
    %s45 = sadd.s32 %s44, 1
    %p48 = scmp.eq.s32.totalorder %s10, 1
    %p49 = scmp.ne.s32.totalorder %s44, %s46
    %p50 = scmp.eq.s32.totalorder %s10, 0
    %p51 = por %p49, %p50
    %p52 = scmp.ne.s32.totalorder %s44, %s46
    %p53 = scmp.eq.s32.totalorder %s15, 1
    %p54 = por %p52, %p53
    %p55 = scmp.ne.s32.totalorder %s46, %s47
    %p56 = scmp.eq.s32.totalorder %s15, 0
    %p57 = por %p55, %p56
    %p58 = scmp.ne.s32.totalorder %s46, %s47
    %p59 = scmp.eq.s32.totalorder %s16, 1
    %p60 = por %p58, %p59
    %p62 = scmp.ne.s32.totalorder %s47, %s61
    %p63 = scmp.eq.s32.totalorder %s16, 0
    %p64 = por %p62, %p63
    %s65 = ssub.s32 %s10, %s17
    %p66 = scmp.eq.s32.totalorder %s65, 0
    %s68 = sadd.s32 %s67, 1
    %s69 = scalar_select %p66, %s67, %s68
    %p72 = pneg %p66
    %p73 = scmp.eq.s32.totalorder %s10, 1
    %p74 = por %p72, %p73
    %p75 = scmp.ne.s32.totalorder %s67, %s70
    %p76 = scmp.eq.s32.totalorder %s10, 0
    %p77 = por %p75, %p76
    %p78 = scmp.ne.s32.totalorder %s67, %s70
    %p79 = scmp.eq.s32.totalorder %s15, 1
    %p80 = por %p78, %p79
    %p81 = scmp.ne.s32.totalorder %s70, %s71
    %p82 = scmp.eq.s32.totalorder %s15, 0
    %p83 = por %p81, %p82
    %p84 = scmp.ne.s32.totalorder %s70, %s71
    %p85 = scmp.eq.s32.totalorder %s16, 1
    %p86 = por %p84, %p85
    %p88 = scmp.ne.s32.totalorder %s71, %s87
    %p89 = scmp.eq.s32.totalorder %s16, 0
    %p90 = por %p88, %p89
    %s91 = ssub.s32 %s10, %s17
    %p92 = scmp.eq.s32.totalorder %s91, 0
    %s94 = sadd.s32 %s93, 1
    %s95 = scalar_select %p92, %s93, %s94
    %p98 = pneg %p92
    %p99 = scmp.eq.s32.totalorder %s10, 1
    %p100 = por %p98, %p99
    %p101 = scmp.ne.s32.totalorder %s93, %s96
    %p102 = scmp.eq.s32.totalorder %s10, 0
    %p103 = por %p101, %p102
    %p104 = scmp.ne.s32.totalorder %s93, %s96
    %p105 = scmp.eq.s32.totalorder %s15, 1
    %p106 = por %p104, %p105
    %p107 = scmp.ne.s32.totalorder %s96, %s97
    %p108 = scmp.eq.s32.totalorder %s15, 0
    %p109 = por %p107, %p108
    %p110 = scmp.ne.s32.totalorder %s96, %s97
    %p111 = scmp.eq.s32.totalorder %s16, 1
    %p112 = por %p110, %p111
    %p114 = scmp.ne.s32.totalorder %s97, %s113
    %p115 = scmp.eq.s32.totalorder %s16, 0
    %p116 = por %p114, %p115
    %p117 = scmp.le.s32.totalorder 1, %s10
    %p118 = scmp.lt.s32.totalorder %s10, 3
    %p119 = pnand %p117, %p118
    %p120 = pneg %p119
    // Predicated region
    $region9: #{prediction_mlp_forward.2} parent=5 // pred_check
      _
    $region10: #{prediction_mlp_forward.2} parent=5 // pred_check_branch
      %122 = sbr.rel (%p119) target = $region12
    $region11: #{prediction_mlp_forward.2} parent=5 // pred_region
      %s123 = ssub.s32 %s10, 1
      // Predicated region
      $region13: #{prediction_mlp_forward.2} parent=11 // pred_check
        %p124 = pneg %p57
      $region14: #{prediction_mlp_forward.2} parent=11 // pred_check_branch
        %126 = sbr.rel (%p124) target = $region16
      $region15: #{prediction_mlp_forward.2} parent=11 // pred_region
        _
      $region16: #{prediction_mlp_forward.2} parent=11 // pred_fallthru
        _
    $region12: #{prediction_mlp_forward.2} parent=5 // pred_fallthru
      _
    %p127 = scmp.lt.s32.totalorder %s10, 2
    // Predicated region
    $region17: #{prediction_mlp_forward.2} parent=5 // pred_check
      %p128 = pneg %p127
    $region18: #{prediction_mlp_forward.2} parent=5 // pred_check_branch
      %130 = sbr.rel (%p128) target = $region20
    $region19: #{prediction_mlp_forward.2} parent=5 // pred_region
      // Predicated region
      $region21: #{prediction_mlp_forward.2} parent=19 // pred_check
        %p131 = pneg %p30
      $region22: #{prediction_mlp_forward.2} parent=19 // pred_check_branch
        %133 = sbr.rel (%p131) target = $region24
      $region23: #{prediction_mlp_forward.2} parent=19 // pred_region
        %s134 = smul.u32 8, %s10
        %p135 = scmp.lt.s32.totalorder %s134, 15
        %s136 = scalar_select %p135, %s134, 15
        %s137 = smul.addr %s136, 4
        %s138 = scalar_lea.vmem %s0, %s137
        %s139 = smul.u32 8, %s10
      $region24: #{prediction_mlp_forward.2} parent=19 // pred_fallthru
        _
    $region20: #{prediction_mlp_forward.2} parent=5 // pred_fallthru
      _
    %p140 = scmp.le.s32.totalorder 1, %s10
    %p141 = scmp.lt.s32.totalorder %s10, 3
    %p142 = pnand %p140, %p141
    %p143 = pneg %p142
    // Predicated region
    $region25: #{prediction_mlp_forward.2} parent=5 // pred_check
      _
    $region26: #{prediction_mlp_forward.2} parent=5 // pred_check_branch
      %145 = sbr.rel (%p142) target = $region28
    $region27: #{prediction_mlp_forward.2} parent=5 // pred_region
      %s146 = ssub.s32 %s10, 1
      %s147 = smul.u32 8, %s15
      %p148 = scmp.lt.s32.totalorder %s147, 15
      %s149 = scalar_select %p148, %s147, 15
      %s150 = smul.addr %s149, 4
      %s151 = scalar_lea.vmem %s0, %s150
      %p152 = pneg %p36
      %p153 = pneg %p33
      %p154 = pneg %p57
      %p155 = pneg %p54
      %p156 = pneg %p83
      %p157 = pneg %p80
      %s158 = smul.u32 8, %s15
      %p159 = scmp.lt.s32.totalorder %s158, 15
      %s160 = scalar_select %p159, %s158, 15
      %s161 = smul.addr %s160, 4
      %s162 = scalar_lea.vmem %s2, %s161
      %p163 = pneg %p109
      %p164 = pneg %p106
      %p165 = scmp.lt.s32.totalorder %s15, 1
      %s166 = scalar_select %p165, %s15, 1
      %s167 = smul.addr %s166, 2
      %s168 = scalar_lea.vmem %s3, %s167
      %s169 = smul.u32 8, %s15
      %p170 = scmp.lt.s32.totalorder %s169, 15
      %s171 = scalar_select %p170, %s169, 15
      %s172 = smul.addr %s171, 4
      %s173 = scalar_lea.vmem %s0, %s172
      %s174 = smul.u32 8, %s15
      %s175 = smul.u32 8, %s15
      %p176 = scmp.lt.s32.totalorder %s175, 15
      %s177 = scalar_select %p176, %s175, 15
      %s178 = smul.addr %s177, 4
      %s179 = scalar_lea.vmem %s2, %s178
      %s180 = smul.u32 8, %s15
      %p181 = scmp.lt.s32.totalorder %s15, 1
      %s182 = scalar_select %p181, %s15, 1
      %s183 = smul.addr %s182, 2
      %s184 = scalar_lea.vmem %s3, %s183
      %v186 = vld [vmem:[%s173] sm:$0xf]
      %v187 = vld [vmem:[%s173 + $0x4] sm:$0xf]
      %v188 = vld [vmem:[%s173 + $0x8] sm:$0xf]
      %v189 = vld [vmem:[%s173 + $0xc] sm:$0xf]
      %v190 = vld [vmem:[%s173 + $0x10] sm:$0xf]
      %v191 = vld [vmem:[%s173 + $0x14] sm:$0xf]
      %v192 = vld [vmem:[%s173 + $0x18] sm:$0xf]
      %v193 = vld [vmem:[%s173 + $0x1c] sm:$0xf]
      %v194 = vld [vmem:[%s1] sm:$0xf]
      %v195 = vld [vmem:[%s1 + $0x4] sm:$0xf]
      %v196 = vld [vmem:[%s1 + $0x8] sm:$0xf]
      %v197 = vld [vmem:[%s1 + $0xc] sm:$0xf]
      %v198 = vld [vmem:[%s1 + $0x10] sm:$0xf]
      %v199 = vld [vmem:[%s1 + $0x14] sm:$0xf]
      %v200 = vld [vmem:[%s1 + $0x18] sm:$0xf]
      %v201 = vld [vmem:[%s1 + $0x1c] sm:$0xf]
      %v202 = vld [vmem:[%s1 + $0x20] sm:$0xf]
      %v203 = vld [vmem:[%s1 + $0x24] sm:$0xf]
      %v204 = vld [vmem:[%s1 + $0x28] sm:$0xf]
      %v205 = vld [vmem:[%s1 + $0x2c] sm:$0xf]
      %v206 = vld [vmem:[%s1 + $0x30] sm:$0xf]
      %v207 = vld [vmem:[%s1 + $0x34] sm:$0xf]
      %v208 = vld [vmem:[%s1 + $0x38] sm:$0xf]
      %v209 = vld [vmem:[%s1 + $0x3c] sm:$0xf]
      %v218 = vunpack.c.l.b16 %v186
      %v219 = vunpack.c.l.b16 %v187
      %v220 = vunpack.c.l.b16 %v188
      %v221 = vunpack.c.l.b16 %v189
      %v222 = vunpack.c.l.b16 %v190
      %v223 = vunpack.c.l.b16 %v191
      %v224 = vunpack.c.l.b16 %v192
      %v225 = vunpack.c.l.b16 %v193
      %v226 = vpack.c.b16 %v219, %v218
      %v227 = vpack.c.b16 %v221, %v220
      %v228 = vpack.c.b16 %v223, %v222
      %v229 = vpack.c.b16 %v225, %v224
      %v250 = vunpack.c.l.b16 %v194
      %v251 = vunpack.c.l.b16 %v195
      %v252 = vunpack.c.l.b16 %v196
      %v253 = vunpack.c.l.b16 %v197
      %v254 = vunpack.c.l.b16 %v198
      %v255 = vunpack.c.l.b16 %v199
      %v256 = vunpack.c.l.b16 %v200
      %v257 = vunpack.c.l.b16 %v201
      %v258 = vunpack.c.l.b16 %v202
      %v259 = vunpack.c.l.b16 %v203
      %v260 = vunpack.c.l.b16 %v204
      %v261 = vunpack.c.l.b16 %v205
      %v262 = vunpack.c.l.b16 %v206
      %v263 = vunpack.c.l.b16 %v207
      %v264 = vunpack.c.l.b16 %v208
      %v265 = vunpack.c.l.b16 %v209
      %v266 = vpack.c.b16 %v251, %v250
      %v267 = vpack.c.b16 %v253, %v252
      %v268 = vpack.c.b16 %v255, %v254
      %v269 = vpack.c.b16 %v257, %v256
      %v270 = vpack.c.b16 %v259, %v258
      %v271 = vpack.c.b16 %v261, %v260
      %v272 = vpack.c.b16 %v263, %v262
      %v273 = vpack.c.b16 %v265, %v264
      %282 = vmatprep.subr.bf16.mxu0 0
      %283 = vmatpush1.bf16.msra.mxu0 %v273
      %284 = vmatprep.subr.bf16.mxu0 0
      %285 = vmatpush1.bf16.msra.mxu0 %v272
      %286 = vmatprep.subr.bf16.mxu0 0
      %287 = vmatpush1.bf16.msra.mxu0 %v271
      %288 = vmatprep.subr.bf16.mxu0 0
      %289 = vmatpush1.bf16.msra.mxu0 %v270
      %290 = vmatprep.subr.bf16.mxu0 0
      %291 = vmatpush1.bf16.msra.mxu0 %v269
      %292 = vmatprep.subr.bf16.mxu0 0
      %293 = vmatpush1.bf16.msra.mxu0 %v268
      %294 = vmatprep.subr.bf16.mxu0 0
      %295 = vmatpush1.bf16.msra.mxu0 %v267
      %296 = vmatprep.subr.bf16.mxu0 0
      %297 = vmatpush1.bf16.msra.mxu0 %v266
      %298 = vmatprep.subr.bf16.mxu0 0
      %299 = vmatpush2.bf16.msra.mxu0 0
      %300 = vmatprep.subr.bf16.mxu0 0
      %301 = vmatpush2.bf16.msra.mxu0 0
      %302 = vmatprep.subr.bf16.mxu0 0
      %303 = vmatpush2.bf16.msra.mxu0 0
      %304 = vmatprep.subr.bf16.mxu0 0
      %305 = vmatpush2.bf16.msra.mxu0 0
      %306 = vmatprep.subr.bf16.mxu0 0
      %307 = vmatpush2.bf16.msra.mxu0 0
      %308 = vmatprep.subr.bf16.mxu0 0
      %309 = vmatpush2.bf16.msra.mxu0 0
      %310 = vmatprep.subr.bf16.mxu0 0
      %311 = vmatpush2.bf16.msra.mxu0 0
      %312 = vmatprep.subr.bf16.mxu0 0
      %313 = vmatpush2.bf16.msra.mxu0 0
      %314 = vmatprep.mubr.bf16.mxu0 0
      %315 = vmatmul.mubr.bf16.gmra.mxu0 %v226
      %v316 = vpop.f32.mrf.mxu0
      %v317 = vadd.f32 0.0, %v316
      %v318 = vpop.f32.mrf.mxu0
      %v319 = vpop.f32.mrf.mxu0
      %v320 = vadd.f32 0.0, %v319
      %v321 = vpop.f32.mrf.mxu0
      %322 = vmatprep.mubr.bf16.mxu0 0
      %323 = vmatmul.mubr.bf16.gmra.mxu0 %v227
      %v324 = vpop.f32.mrf.mxu0
      %v325 = vadd.f32 0.0, %v324
      %v326 = vpop.f32.mrf.mxu0
      %v327 = vpop.f32.mrf.mxu0
      %v328 = vadd.f32 0.0, %v327
      %v329 = vpop.f32.mrf.mxu0
      %330 = vmatprep.mubr.bf16.mxu0 0
      %331 = vmatmul.mubr.bf16.gmra.mxu0 %v228
      %v332 = vpop.f32.mrf.mxu0
      %v333 = vadd.f32 0.0, %v332
      %v334 = vpop.f32.mrf.mxu0
      %v335 = vpop.f32.mrf.mxu0
      %v336 = vadd.f32 0.0, %v335
      %v337 = vpop.f32.mrf.mxu0
      %338 = vmatprep.mubr.bf16.mxu0 0
      %339 = vmatmul.mubr.bf16.gmra.mxu0 %v229
      %v340 = vpop.f32.mrf.mxu0
      %v341 = vadd.f32 0.0, %v340
      %v342 = vpop.f32.mrf.mxu0
      %v343 = vpop.f32.mrf.mxu0
      %v344 = vadd.f32 0.0, %v343
      %v345 = vpop.f32.mrf.mxu0
      %346 = vdwg.mxu0
      %v347 = vpack.c.bf16 %v320, %v317
      %v348 = vpack.c.bf16 %v328, %v325
      %v349 = vpack.c.bf16 %v336, %v333
      %v350 = vpack.c.bf16 %v344, %v341
      %v355 = vunpack.c.l.b16 %v347
      %v356 = vunpack.c.h.b16 %v347
      %v357 = vunpack.c.l.b16 %v348
      %v358 = vunpack.c.h.b16 %v348
      %v359 = vunpack.c.l.b16 %v349
      %v360 = vunpack.c.h.b16 %v349
      %v361 = vunpack.c.l.b16 %v350
      %v362 = vunpack.c.h.b16 %v350
      %v363 = vpack.c.b16 %v355, %v355
      %v364 = vpack.c.b16 %v356, %v356
      %v365 = vpack.c.b16 %v357, %v357
      %v366 = vpack.c.b16 %v358, %v358
      %v367 = vpack.c.b16 %v359, %v359
      %v368 = vpack.c.b16 %v360, %v360
      %v369 = vpack.c.b16 %v361, %v361
      %v370 = vpack.c.b16 %v362, %v362
      %379 = vst [vmem:[%s179] sm:$0xf] %v363
      %380 = vst [vmem:[%s179 + $0x4] sm:$0xf] %v364
      %381 = vst [vmem:[%s179 + $0x8] sm:$0xf] %v365
      %382 = vst [vmem:[%s179 + $0xc] sm:$0xf] %v366
      %383 = vst [vmem:[%s179 + $0x10] sm:$0xf] %v367
      %384 = vst [vmem:[%s179 + $0x14] sm:$0xf] %v368
      %385 = vst [vmem:[%s179 + $0x18] sm:$0xf] %v369
      %386 = vst [vmem:[%s179 + $0x1c] sm:$0xf] %v370
      %v387 = vadd.f32 %v317, %v320
      %v388 = vadd.f32 %v387, %v325
      %v389 = vadd.f32 %v388, %v328
      %v390 = vadd.f32 %v389, %v333
      %v391 = vadd.f32 %v390, %v336
      %v392 = vadd.f32 %v391, %v341
      %v393 = vadd.f32 %v392, %v344
      %v394 = vrot.slane %v393, 4
      %v395 = vadd.f32 %v393, %v394
      %v396 = vrot.slane %v395, 2
      %v397 = vadd.f32 %v395, %v396
      %v398 = vrot.slane %v397, 1
      %v399 = vadd.f32 %v397, %v398
      %v400 = vmul.f32 %v317, %v317
      %v401 = vmul.f32 %v320, %v320
      %v402 = vmul.f32 %v325, %v325
      %v403 = vmul.f32 %v328, %v328
      %v404 = vmul.f32 %v333, %v333
      %v405 = vmul.f32 %v336, %v336
      %v406 = vmul.f32 %v341, %v341
      %v407 = vmul.f32 %v344, %v344
      %v408 = vadd.f32 %v400, %v401
      %v409 = vadd.f32 %v408, %v402
      %v410 = vadd.f32 %v409, %v403
      %v411 = vadd.f32 %v410, %v404
      %v412 = vadd.f32 %v411, %v405
      %v413 = vadd.f32 %v412, %v406
      %v414 = vadd.f32 %v413, %v407
      %v415 = vrot.slane %v414, 4
      %v416 = vadd.f32 %v414, %v415
      %v417 = vrot.slane %v416, 2
      %v418 = vadd.f32 %v416, %v417
      %v419 = vrot.slane %v418, 1
      %v420 = vadd.f32 %v418, %v419
      %v421 = vlaneseq
      %v422 = vshrl.u32 %v421, 7
      %vm423 = vcmp.eq.s32.totalorder %v422, 0
      %v424 = vsel %vm423, %v399, %v420
      %425 = vst [vmem:[%s184] sm:$0x3] %v424
      %s426 = smul.u32 8, %s15
      %p427 = scmp.lt.s32.totalorder %s426, 15
      %s428 = scalar_select %p427, %s426, 15
      %s429 = smul.addr %s428, 4
      %s430 = scalar_lea.vmem %s2, %s429
      %p431 = scmp.lt.s32.totalorder %s15, 1
      %s432 = scalar_select %p431, %s15, 1
      %s433 = smul.addr %s432, 2
      %s434 = scalar_lea.vmem %s3, %s433
      // Predicated region
      $region29: #{prediction_mlp_forward.2} parent=27 // pred_check
        %p435 = pneg %p80
      $region30: #{prediction_mlp_forward.2} parent=27 // pred_check_branch
        %437 = sbr.rel (%p435) target = $region32
      $region31: #{prediction_mlp_forward.2} parent=27 // pred_region
        %s438 = smul.u32 8, %s15
      $region32: #{prediction_mlp_forward.2} parent=27 // pred_fallthru
        _
      // Predicated region
      $region33: #{prediction_mlp_forward.2} parent=27 // pred_check
        %p439 = pneg %p106
      $region34: #{prediction_mlp_forward.2} parent=27 // pred_check_branch
        %441 = sbr.rel (%p439) target = $region36
      $region35: #{prediction_mlp_forward.2} parent=27 // pred_region
        _
      $region36: #{prediction_mlp_forward.2} parent=27 // pred_fallthru
        _
    $region28: #{prediction_mlp_forward.2} parent=5 // pred_fallthru
      _
    %p442 = scmp.le.s32.totalorder 2, %s10
    // Predicated region
    $region37: #{prediction_mlp_forward.2} parent=5 // pred_check
      %p443 = pneg %p442
    $region38: #{prediction_mlp_forward.2} parent=5 // pred_check_branch
      %445 = sbr.rel (%p443) target = $region40
    $region39: #{prediction_mlp_forward.2} parent=5 // pred_region
      %s446 = ssub.s32 %s10, 2
      // Predicated region
      $region41: #{prediction_mlp_forward.2} parent=39 // pred_check
        %p447 = pneg %p86
      $region42: #{prediction_mlp_forward.2} parent=39 // pred_check_branch
        %449 = sbr.rel (%p447) target = $region44
      $region43: #{prediction_mlp_forward.2} parent=39 // pred_region
        %s450 = smul.u32 8, %s16
        %p451 = scmp.lt.s32.totalorder %s450, 15
        %s452 = scalar_select %p451, %s450, 15
        %s453 = smul.addr %s452, 4
        %s454 = scalar_lea.vmem %s2, %s453
      $region44: #{prediction_mlp_forward.2} parent=39 // pred_fallthru
        _
      // Predicated region
      $region45: #{prediction_mlp_forward.2} parent=39 // pred_check
        %p455 = pneg %p112
      $region46: #{prediction_mlp_forward.2} parent=39 // pred_check_branch
        %457 = sbr.rel (%p455) target = $region48
      $region47: #{prediction_mlp_forward.2} parent=39 // pred_region
        %p458 = scmp.lt.s32.totalorder %s16, 1
        %s459 = scalar_select %p458, %s16, 1
        %s460 = smul.addr %s459, 2
        %s461 = scalar_lea.vmem %s3, %s460
      $region48: #{prediction_mlp_forward.2} parent=39 // pred_fallthru
        _
    $region40: #{prediction_mlp_forward.2} parent=5 // pred_fallthru
      _
  $region6: #{prediction_mlp_forward.2} parent=0 // loop_footer
    %s14 = sadd.s32 1, %s10
  $region7: #{prediction_mlp_forward.2} parent=0 // loop_footer_branch
    %9 = sbr.rel target = $region3
  $region8: #{prediction_mlp_forward.2} parent=0 // loop_exit
    _

</llo_original>
